<compile_context>
chip_gen: v7x
topology: tpu7x:2x2x1
jax: 0.10.0
libtpu: 0.0.40
codegen_flags: <defaults>
</compile_context>

<pallas_src>
import functools

import jax
import jax.numpy as jnp
from jax.experimental import pallas as pl
from jax.experimental.pallas import tpu as pltpu

LANES = 128
SUBLANES = 8


def _ofst_l1_kernel(pred_ref, gt_ref, wgt_ref, num_ref, den_ref, *,
                    tile_rows, hw, needs_mask):
    # pred_ref / gt_ref : (c, tile_rows, 128)
    # wgt_ref           : (tile_rows, 128)
    # num_ref / den_ref : (8, 128) resident accumulators (same block across j)
    j = pl.program_id(2)

    @pl.when(j == 0)
    def _():
        num_ref[...] = jnp.zeros_like(num_ref)
        den_ref[...] = jnp.zeros_like(den_ref)

    p = pred_ref[...].astype(jnp.float32)
    g = gt_ref[...].astype(jnp.float32)
    w = wgt_ref[...].astype(jnp.float32)

    ad = jnp.abs(p - g)                                   # (c, T, 128)

    if needs_mask:
        # Mask pixels past h*w (lane padding and/or rows past n_rows in the
        # ragged last tile; those VMEM values are undefined -> use where/select).
        row = jax.lax.broadcasted_iota(jnp.int32, (tile_rows, LANES), 0)
        lane = jax.lax.broadcasted_iota(jnp.int32, (tile_rows, LANES), 1)
        idx = (j * tile_rows + row) * LANES + lane
        valid = idx < hw
        w = jnp.where(valid, w, 0.0)
        contrib = jnp.where(valid[None, :, :], ad * w[None, :, :], 0.0)
    else:
        contrib = ad * w[None, :, :]

    # Reduce channel axis (vreg adds), then fold rows into the 8-sublane
    # accumulator.  Pure VPU work per step; the cross-lane reduce happens once
    # in the wrapper on the tiny (8,128) partials.
    contrib2 = contrib.sum(axis=0)                        # (T, 128)
    num_ref[...] += contrib2.reshape(tile_rows // SUBLANES, SUBLANES, LANES).sum(axis=0)
    den_ref[...] += w.reshape(tile_rows // SUBLANES, SUBLANES, LANES).sum(axis=0)


def ofst_map_l1_loss(rgb_labels, pred, gt, *, normalize=True, reduction="mean",
                     tile_rows=512):
    """Pallas implementation of OfstMapL1Loss.forward."""
    bs, n_kpts, c, h, w = pred.shape
    assert gt.shape == pred.shape
    hw = h * w

    # Validity weight from labels, matching torch: (rgb_labels > 1e-8).float()
    wgt = (rgb_labels.reshape(bs, hw).astype(jnp.float32) > 1e-8).astype(jnp.float32)

    n_rows = pl.cdiv(hw, LANES)              # 128-lane rows per (b, k, c)
    hw_pad = n_rows * LANES

    pred_f = pred.reshape(bs, n_kpts, c, hw)
    gt_f = gt.reshape(bs, n_kpts, c, hw)
    if hw_pad != hw:
        # TODO(synk): this lane-padding copies pred/gt once; only hit when h*w % 128 != 0.
        pad = hw_pad - hw
        pred_f = jnp.pad(pred_f, ((0, 0), (0, 0), (0, 0), (0, pad)))
        gt_f = jnp.pad(gt_f, ((0, 0), (0, 0), (0, 0), (0, pad)))
        wgt = jnp.pad(wgt, ((0, 0), (0, pad)))
    pred_f = pred_f.reshape(bs, n_kpts, c, n_rows, LANES)
    gt_f = gt_f.reshape(bs, n_kpts, c, n_rows, LANES)
    wgt_f = wgt.reshape(bs, n_rows, LANES)

    # Large row tiles (HBM-bandwidth bound), multiple of 8, clamped to n_rows.
    assert tile_rows % SUBLANES == 0
    t_rows = min(tile_rows, ((n_rows + SUBLANES - 1) // SUBLANES) * SUBLANES)
    grid_j = pl.cdiv(n_rows, t_rows)
    needs_mask = (hw != hw_pad) or (n_rows % t_rows != 0)

    kernel = functools.partial(_ofst_l1_kernel, tile_rows=t_rows, hw=hw,
                               needs_mask=needs_mask)

    num_part, den_part = pl.pallas_call(
        kernel,
        out_shape=(
            jax.ShapeDtypeStruct((bs, n_kpts, SUBLANES, LANES), jnp.float32),
            jax.ShapeDtypeStruct((bs, n_kpts, SUBLANES, LANES), jnp.float32),
        ),
        grid_spec=pltpu.PrefetchScalarGridSpec(
            num_scalar_prefetch=0,
            grid=(bs, n_kpts, grid_j),
            in_specs=[
                pl.BlockSpec((None, None, c, t_rows, LANES),
                             lambda b, k, j: (b, k, 0, j, 0)),
                pl.BlockSpec((None, None, c, t_rows, LANES),
                             lambda b, k, j: (b, k, 0, j, 0)),
                pl.BlockSpec((None, t_rows, LANES),
                             lambda b, k, j: (b, j, 0)),
            ],
            out_specs=[
                pl.BlockSpec((None, None, SUBLANES, LANES),
                             lambda b, k, j: (b, k, 0, 0)),
                pl.BlockSpec((None, None, SUBLANES, LANES),
                             lambda b, k, j: (b, k, 0, 0)),
            ],
        ),
        compiler_params=pltpu.CompilerParams(
            dimension_semantics=("parallel", "parallel", "arbitrary"),
        ),
    )(pred_f, gt_f, wgt_f)

    num = num_part.sum(axis=(2, 3))                 # (bs, n_kpts): sum wgt*|pred-gt|
    wsum = den_part.sum(axis=(2, 3))                # (bs, n_kpts): sum_{h,w} wgt[b]

    if normalize:
        in_loss = num / (c * wsum + 0.001)          # torch: sum(wgt over c,h,w) + 0.001
    else:
        in_loss = num

    if reduction == "mean":
        if normalize:
            return jnp.mean(in_loss)
        return jnp.sum(num) / (bs * n_kpts * c * h * w)
    elif reduction == "sum":
        return jnp.sum(in_loss)
    elif reduction is None:
        if normalize:
            return in_loss                          # (bs, n_kpts), as in torch
        # TODO(synk): unreduced per-element loss map not supported by this reduction kernel.
        raise NotImplementedError("normalize=False with reduction=None is not supported")
    else:
        raise ValueError(f"Invalid reduction method: {reduction}")


if __name__ == "__main__":
    key = jax.random.PRNGKey(0)
    k1, k2, k3 = jax.random.split(key, 3)

    bs, n_kpts, c, h, w = 2, 4, 3, 16, 16
    pred = jax.random.normal(k1, (bs, n_kpts, c, h, w), dtype=jnp.float32)
    gt = jax.random.normal(k2, (bs, n_kpts, c, h, w), dtype=jnp.float32)
    # Segmentation-like labels: 0 = background (masked out), >0 = foreground.
    rgb_labels = jax.random.randint(k3, (bs, h, w), 0, 3).astype(jnp.float32)

    loss = ofst_map_l1_loss(rgb_labels, pred, gt)
    loss = jax.block_until_ready(loss)

    # Pure-JAX reference of the torch forward (normalize=True, reduction='mean').
    wgt = (rgb_labels > 1e-8).astype(jnp.float32)                  # (bs, h, w)
    wgt_full = jnp.broadcast_to(wgt[:, None, None, :, :], pred.shape)
    abs_diff = jnp.abs(pred - gt) * wgt_full
    num_ref = abs_diff.reshape(bs, n_kpts, -1).sum(-1)
    den_ref = wgt_full.reshape(bs, n_kpts, -1).sum(-1) + 0.001
    ref = jnp.mean(num_ref / den_ref)

    assert jnp.allclose(loss, ref, rtol=1e-5, atol=1e-6), (loss, ref)
    print("KERNEL_OK")
</pallas_src>

<mosaic_0001>
module attributes {stable_mosaic.version = 11 : i64} {
  func.func @_ofst_l1_kernel(%arg0: i32, %arg1: i32, %arg2: i32, %arg3: memref<1x1x3x8x128xf32, #tpu.memory_space<vmem>>, %arg4: memref<1x1x3x8x128xf32, #tpu.memory_space<vmem>>, %arg5: memref<1x8x128xf32, #tpu.memory_space<vmem>>, %arg6: memref<1x1x8x128xf32, #tpu.memory_space<vmem>>, %arg7: memref<1x1x8x128xf32, #tpu.memory_space<vmem>>) attributes {dimension_semantics = [#tpu.dimension_semantics<parallel>, #tpu.dimension_semantics<parallel>, #tpu.dimension_semantics<arbitrary>], iteration_bounds = array<i64: 2, 4, 1>, scalar_prefetch = 0 : i64, scratch_operands = 0 : i64, tpu.core_type = #tpu.core_type<tc>, window_params = [{transform_indices = @transform_0, window_bounds = array<i64: 1, 1, 3, 8, 128>}, {transform_indices = @transform_1, window_bounds = array<i64: 1, 1, 3, 8, 128>}, {transform_indices = @transform_2, window_bounds = array<i64: 1, 8, 128>}, {transform_indices = @transform_3, window_bounds = array<i64: 1, 1, 8, 128>}, {transform_indices = @transform_4, window_bounds = array<i64: 1, 1, 8, 128>}]} {
    %c0_i32 = arith.constant 0 : i32
    %0 = arith.cmpi eq, %arg2, %c0_i32 : i32
    %1 = arith.extui %0 : i1 to i32
    %c0_i32_0 = arith.constant 0 : i32
    %2 = arith.cmpi ne, %1, %c0_i32_0 : i32
    scf.if %2 {
      %cst_33 = arith.constant 0.000000e+00 : f32
      %48 = vector.broadcast %cst_33 : f32 to vector<8x128xf32>
      %c0_34 = arith.constant 0 : index
      %c0_35 = arith.constant 0 : index
      %c0_36 = arith.constant 0 : index
      %c0_37 = arith.constant 0 : index
      %49 = vector.load %arg6[%c0_34, %c0_35, %c0_36, %c0_37] : memref<1x1x8x128xf32, #tpu.memory_space<vmem>>, vector<1x1x8x128xf32>
      %50 = vector.shape_cast %49 : vector<1x1x8x128xf32> to vector<8x128xf32>
      %51 = vector.shape_cast %48 : vector<8x128xf32> to vector<1x1x8x128xf32>
      tpu.vector_store %arg6[%c0_34, %c0_35, %c0_36, %c0_37], %51 {strides = array<i32>} : memref<1x1x8x128xf32, #tpu.memory_space<vmem>>, vector<1x1x8x128xf32>,
      %cst_38 = arith.constant 0.000000e+00 : f32
      %52 = vector.broadcast %cst_38 : f32 to vector<8x128xf32>
      %c0_39 = arith.constant 0 : index
      %c0_40 = arith.constant 0 : index
      %c0_41 = arith.constant 0 : index
      %c0_42 = arith.constant 0 : index
      %53 = vector.load %arg7[%c0_39, %c0_40, %c0_41, %c0_42] : memref<1x1x8x128xf32, #tpu.memory_space<vmem>>, vector<1x1x8x128xf32>
      %54 = vector.shape_cast %53 : vector<1x1x8x128xf32> to vector<8x128xf32>
      %55 = vector.shape_cast %52 : vector<8x128xf32> to vector<1x1x8x128xf32>
      tpu.vector_store %arg7[%c0_39, %c0_40, %c0_41, %c0_42], %55 {strides = array<i32>} : memref<1x1x8x128xf32, #tpu.memory_space<vmem>>, vector<1x1x8x128xf32>,
    } else {
    }
    %c0 = arith.constant 0 : index
    %c0_1 = arith.constant 0 : index
    %c0_2 = arith.constant 0 : index
    %c0_3 = arith.constant 0 : index
    %c0_4 = arith.constant 0 : index
    %3 = vector.load %arg3[%c0, %c0_1, %c0_2, %c0_3, %c0_4] : memref<1x1x3x8x128xf32, #tpu.memory_space<vmem>>, vector<1x1x3x8x128xf32>
    %4 = vector.shape_cast %3 : vector<1x1x3x8x128xf32> to vector<3x8x128xf32>
    %c0_5 = arith.constant 0 : index
    %c0_6 = arith.constant 0 : index
    %c0_7 = arith.constant 0 : index
    %c0_8 = arith.constant 0 : index
    %c0_9 = arith.constant 0 : index
    %5 = vector.load %arg4[%c0_5, %c0_6, %c0_7, %c0_8, %c0_9] : memref<1x1x3x8x128xf32, #tpu.memory_space<vmem>>, vector<1x1x3x8x128xf32>
    %6 = vector.shape_cast %5 : vector<1x1x3x8x128xf32> to vector<3x8x128xf32>
    %c0_10 = arith.constant 0 : index
    %c0_11 = arith.constant 0 : index
    %c0_12 = arith.constant 0 : index
    %7 = vector.load %arg5[%c0_10, %c0_11, %c0_12] : memref<1x8x128xf32, #tpu.memory_space<vmem>>, vector<1x8x128xf32>
    %8 = vector.shape_cast %7 : vector<1x8x128xf32> to vector<8x128xf32>
    %9 = arith.subf %4, %6 : vector<3x8x128xf32>
    %10 = math.absf %9 : vector<3x8x128xf32>
    %11 = tpu.iota {dimensions = array<i32: 0>} : vector<8x128xi32>
    %12 = tpu.iota {dimensions = array<i32: 1>} : vector<8x128xi32>
    %c8_i32 = arith.constant 8 : i32
    %13 = arith.muli %arg2, %c8_i32 : i32
    %14 = vector.broadcast %13 : i32 to vector<8x128xi32>
    %15 = arith.addi %14, %11 : vector<8x128xi32>
    %c128_i32 = arith.constant 128 : i32
    %16 = vector.broadcast %c128_i32 : i32 to vector<8x128xi32>
    %17 = arith.muli %15, %16 : vector<8x128xi32>
    %18 = arith.addi %17, %12 : vector<8x128xi32>
    %c256_i32 = arith.constant 256 : i32
    %19 = vector.broadcast %c256_i32 : i32 to vector<8x128xi32>
    %20 = arith.cmpi slt, %18, %19 : vector<8x128xi32>
    %cst = arith.constant 0.000000e+00 : f32
    %21 = vector.broadcast %cst : f32 to vector<8x128xf32>
    %22 = arith.select %20, %8, %21 : vector<8x128xi1>, vector<8x128xf32>
    %23 = vector.shape_cast %20 : vector<8x128xi1> to vector<1x8x128xi1>
    %24 = vector.shape_cast %22 : vector<8x128xf32> to vector<1x8x128xf32>
    %25 = vector.broadcast %24 : vector<1x8x128xf32> to vector<3x8x128xf32>
    %26 = arith.mulf %10, %25 : vector<3x8x128xf32>
    %cst_13 = arith.constant 0.000000e+00 : f32
    %27 = vector.shape_cast %23 : vector<1x8x128xi1> to vector<1x8x128xi1>
    %28 = vector.broadcast %27 : vector<1x8x128xi1> to vector<3x8x128xi1>
    %29 = vector.broadcast %cst_13 : f32 to vector<3x8x128xf32>
    %30 = arith.select %28, %26, %29 : vector<3x8x128xi1>, vector<3x8x128xf32>
    %cst_14 = arith.constant dense<0.000000e+00> : vector<8x128xf32>
    %31 = vector.multi_reduction <add>, %30, %cst_14 [0] : vector<3x8x128xf32> to vector<8x128xf32>
    %c0_15 = arith.constant 0 : index
    %c0_16 = arith.constant 0 : index
    %c0_17 = arith.constant 0 : index
    %c0_18 = arith.constant 0 : index
    %32 = vector.load %arg6[%c0_15, %c0_16, %c0_17, %c0_18] : memref<1x1x8x128xf32, #tpu.memory_space<vmem>>, vector<1x1x8x128xf32>
    %33 = vector.shape_cast %32 : vector<1x1x8x128xf32> to vector<8x128xf32>
    %34 = vector.shape_cast %31 : vector<8x128xf32> to vector<1x8x128xf32>
    %cst_19 = arith.constant dense<0.000000e+00> : vector<8x128xf32>
    %35 = vector.multi_reduction <add>, %34, %cst_19 [0] : vector<1x8x128xf32> to vector<8x128xf32>
    %36 = arith.addf %33, %35 : vector<8x128xf32>
    %c0_20 = arith.constant 0 : index
    %c0_21 = arith.constant 0 : index
    %c0_22 = arith.constant 0 : index
    %c0_23 = arith.constant 0 : index
    %37 = vector.load %arg6[%c0_20, %c0_21, %c0_22, %c0_23] : memref<1x1x8x128xf32, #tpu.memory_space<vmem>>, vector<1x1x8x128xf32>
    %38 = vector.shape_cast %37 : vector<1x1x8x128xf32> to vector<8x128xf32>
    %39 = vector.shape_cast %36 : vector<8x128xf32> to vector<1x1x8x128xf32>
    tpu.vector_store %arg6[%c0_20, %c0_21, %c0_22, %c0_23], %39 {strides = array<i32>} : memref<1x1x8x128xf32, #tpu.memory_space<vmem>>, vector<1x1x8x128xf32>,
    %c0_24 = arith.constant 0 : index
    %c0_25 = arith.constant 0 : index
    %c0_26 = arith.constant 0 : index
    %c0_27 = arith.constant 0 : index
    %40 = vector.load %arg7[%c0_24, %c0_25, %c0_26, %c0_27] : memref<1x1x8x128xf32, #tpu.memory_space<vmem>>, vector<1x1x8x128xf32>
    %41 = vector.shape_cast %40 : vector<1x1x8x128xf32> to vector<8x128xf32>
    %42 = vector.shape_cast %22 : vector<8x128xf32> to vector<1x8x128xf32>
    %cst_28 = arith.constant dense<0.000000e+00> : vector<8x128xf32>
    %43 = vector.multi_reduction <add>, %42, %cst_28 [0] : vector<1x8x128xf32> to vector<8x128xf32>
    %44 = arith.addf %41, %43 : vector<8x128xf32>
    %c0_29 = arith.constant 0 : index
    %c0_30 = arith.constant 0 : index
    %c0_31 = arith.constant 0 : index
    %c0_32 = arith.constant 0 : index
    %45 = vector.load %arg7[%c0_29, %c0_30, %c0_31, %c0_32] : memref<1x1x8x128xf32, #tpu.memory_space<vmem>>, vector<1x1x8x128xf32>
    %46 = vector.shape_cast %45 : vector<1x1x8x128xf32> to vector<8x128xf32>
    %47 = vector.shape_cast %44 : vector<8x128xf32> to vector<1x1x8x128xf32>
    tpu.vector_store %arg7[%c0_29, %c0_30, %c0_31, %c0_32], %47 {strides = array<i32>} : memref<1x1x8x128xf32, #tpu.memory_space<vmem>>, vector<1x1x8x128xf32>,
    return
  }
  func.func @transform_0(%arg0: i32, %arg1: i32, %arg2: i32) -> (i32, i32, i32, i32, i32) {
    %c0_i32 = arith.constant 0 : i32
    %c0_i32_0 = arith.constant 0 : i32
    %c0_i32_1 = arith.constant 0 : i32
    return %arg0, %arg1, %c0_i32, %arg2, %c0_i32_0 : i32, i32, i32, i32, i32
  }
  func.func @transform_1(%arg0: i32, %arg1: i32, %arg2: i32) -> (i32, i32, i32, i32, i32) {
    %c0_i32 = arith.constant 0 : i32
    %c0_i32_0 = arith.constant 0 : i32
    %c0_i32_1 = arith.constant 0 : i32
    return %arg0, %arg1, %c0_i32, %arg2, %c0_i32_0 : i32, i32, i32, i32, i32
  }
  func.func @transform_2(%arg0: i32, %arg1: i32, %arg2: i32) -> (i32, i32, i32) {
    %c0_i32 = arith.constant 0 : i32
    %c0_i32_0 = arith.constant 0 : i32
    return %arg0, %arg2, %c0_i32 : i32, i32, i32
  }
  func.func @transform_3(%arg0: i32, %arg1: i32, %arg2: i32) -> (i32, i32, i32, i32) {
    %c0_i32 = arith.constant 0 : i32
    %c0_i32_0 = arith.constant 0 : i32
    %c0_i32_1 = arith.constant 0 : i32
    return %arg0, %arg1, %c0_i32, %c0_i32_0 : i32, i32, i32, i32
  }
  func.func @transform_4(%arg0: i32, %arg1: i32, %arg2: i32) -> (i32, i32, i32, i32) {
    %c0_i32 = arith.constant 0 : i32
    %c0_i32_0 = arith.constant 0 : i32
    %c0_i32_1 = arith.constant 0 : i32
    return %arg0, %arg1, %c0_i32, %c0_i32_0 : i32, i32, i32, i32
  }
}

</mosaic_0001>

<llo_original>
// kernel: tpu_custom_call.1
$region0: #{tpu_custom_call.1}
  #allocation0 [shape = 'u32[]', space=smem, size = 0x4, offset = 0x4, fixed_abs, tag = 'smem constant byte address 0x4 - core index']
  #allocation1 [shape = 'u32[144,128]{1,0:T(1,128)}', space=vmem, size = 0x12000, scoped, tag = 'internal scratch']
  #allocation10 [shape = 's32[]', space=sflag, size = 0x4, offset = 0, fixed_abs, tag = 'sflag constant byte address 0x0 - dummy sync flag']
  #allocation12 [shape = 's32[]', space=sflag, size = 0x4, offset = 0, fixed_abs, tag = 'sflag constant byte address 0x0 - dummy sync flag']
  %s0 = inlined_call_operand.hbm [shape: f32[2,4,3,2,128], index: 0, kind: input, shape index: {}]
  %s1 = inlined_call_operand.hbm [shape: f32[2,4,3,2,128], index: 1, kind: input, shape index: {}]
  %s2 = inlined_call_operand.vmem [shape: f32[2,2,128], index: 2, kind: input, shape index: {}]
  %s3 = inlined_call_operand.hbm [shape: f32[2,4,8,128], index: 3, kind: output, shape index: {0}]
  %s4 = inlined_call_operand.hbm [shape: f32[2,4,8,128], index: 4, kind: output, shape index: {1}]
  %5 = xla_tuple %s3, %s4
  %s6 = sld [smem:[#allocation0]]
  $region65: #{tpu_custom_call.1} parent=0
    _
  %s8 = ssub.s32 1, %s6
  %s9 = scalar_select 0, %s8, %s6
  $region1: #{tpu_custom_call.1} parent=0
    #allocation2 [shape = 'u8[24576]{0}', space=vmem, size = 0x6000, scoped, tag = 'input window, operand 0']
    #allocation3 [shape = 's32[2]{0}', space=sflag, size = 0x8, scoped, tag = 'scoped memory for tpu_custom_call.1']
    #allocation4 [shape = 's32[2]{0}', space=sflag, size = 0x8, scoped, tag = 'scoped memory for tpu_custom_call.1']
    #allocation5 [shape = 'u8[24576]{0}', space=vmem, size = 0x6000, scoped, tag = 'input window, operand 1']
    #allocation6 [shape = 's32[2]{0}', space=sflag, size = 0x8, scoped, tag = 'scoped memory for tpu_custom_call.1']
    #allocation7 [shape = 'u8[8192]{0}', space=vmem, size = 0x2000, scoped, tag = 'output window, operand 0']
    #allocation8 [shape = 'u8[8192]{0}', space=vmem, size = 0x2000, scoped, tag = 'output window, operand 1']
    #allocation9 [shape = 's32[2]{0}', space=sflag, size = 0x8, scoped, tag = 'scoped memory for tpu_custom_call.1']
    %10 = vsyncpa [#allocation3], 0
    %s11 = scalar_lea.sflag [#allocation3], 1
    %12 = vsyncpa %s11, 0
    %13 = vsyncpa [#allocation6], 0
    %s14 = scalar_lea.sflag [#allocation6], 1
    %15 = vsyncpa %s14, 0
    %16 = vsyncpa [#allocation4], 0
    %s17 = scalar_lea.sflag [#allocation4], 1
    %18 = vsyncpa %s17, 0
    %19 = vsyncpa [#allocation9], 0
    %s20 = scalar_lea.sflag [#allocation9], 1
    %21 = vsyncpa %s20, 0
    loop: start=0, step=1, limit=10
    $region2: #{tpu_custom_call.1} parent=1 // loop_pre_header
      _
    $region3: #{tpu_custom_call.1} parent=1 // loop_header
      %s23 = sphi 0, %s27
      %p24 = scmp.ge.s32.totalorder %s23, 10
      %s30 = sphi 0, %s49
      %s31 = sphi 0, %s45
      %s32 = sphi 0, %s41
      %s33 = sphi 0, %s30
      %s34 = sphi 0, %s31
      %s35 = sphi 0, %s32
      %s36 = sphi 0, %s33
      %s37 = sphi 0, %s34
      %s38 = sphi 0, %s35
      %s56 = sphi 0, %s58
      %s59 = sphi 0, %s56
      %s60 = sphi 0, %s59
      %s76 = sphi 0, %s60
      %s86 = sphi 0, %s88
      %s89 = sphi 0, %s86
      %s90 = sphi 0, %s89
      %s106 = sphi 0, %s90
      %s114 = sphi 0, %s116
      %s117 = sphi 0, %s114
      %s118 = sphi 0, %s117
      %s134 = sphi 0, %s118
      %s142 = sphi 0, %s144
      %s145 = sphi 0, %s142
      %s146 = sphi 0, %s145
      %s162 = sphi 0, %s146
      %s170 = sphi 0, %s172
      %s173 = sphi 0, %s170
      %s174 = sphi 0, %s173
      %s190 = sphi 0, %s174
    $region4: #{tpu_custom_call.1} parent=1 // loop_header_branch
      %26 = sbr.rel (%p24) target = $region8
    $region5: #{tpu_custom_call.1} parent=1 // loop_body
      %s28 = ssub.s32 %s23, 1
      %s29 = ssub.s32 %s23, 2
      %s39 = sadd.s32 1, %s32
      %p40 = scmp.ge.s32.totalorder %s39, 1
      %s41 = scalar_select %p40, 0, %s39
      %s42 = sadd.s32 1, %s31
      %s43 = scalar_select %p40, %s42, %s31
      %p44 = scmp.ge.s32.totalorder %s43, 4
      %s45 = scalar_select %p44, 0, %s43
      %s46 = sadd.s32 1, %s30
      %s47 = scalar_select %p44, %s46, %s30
      %p48 = scmp.ge.s32.totalorder %s47, 2
      %s49 = scalar_select %p48, 0, %s47
      %s50 = ssub.s32 %s30, %s49
      %s51 = ssub.s32 %s31, %s45
      %s52 = sor.u32 %s50, %s51
      %s53 = ssub.s32 %s32, %s41
      %s54 = sor.u32 %s52, %s53
      %p55 = scmp.eq.s32.totalorder %s54, 0
      %s57 = sadd.s32 %s56, 1
      %s58 = scalar_select %p55, %s56, %s57
      %p61 = pneg %p55
      %p62 = scmp.eq.s32.totalorder %s23, 7
      %p63 = por %p61, %p62
      %p64 = scmp.ne.s32.totalorder %s56, %s59
      %p65 = scmp.eq.s32.totalorder %s23, 0
      %p66 = por %p64, %p65
      %p67 = scmp.ne.s32.totalorder %s56, %s59
      %p68 = scmp.eq.s32.totalorder %s28, 7
      %p69 = por %p67, %p68
      %p70 = scmp.ne.s32.totalorder %s59, %s60
      %p71 = scmp.eq.s32.totalorder %s28, 0
      %p72 = por %p70, %p71
      %p73 = scmp.ne.s32.totalorder %s59, %s60
      %p74 = scmp.eq.s32.totalorder %s29, 7
      %p75 = por %p73, %p74
      %p77 = scmp.ne.s32.totalorder %s60, %s76
      %p78 = scmp.eq.s32.totalorder %s29, 0
      %p79 = por %p77, %p78
      %s80 = ssub.s32 %s30, %s49
      %s81 = ssub.s32 %s31, %s45
      %s82 = sor.u32 %s80, %s81
      %s83 = ssub.s32 %s32, %s41
      %s84 = sor.u32 %s82, %s83
      %p85 = scmp.eq.s32.totalorder %s84, 0
      %s87 = sadd.s32 %s86, 1
      %s88 = scalar_select %p85, %s86, %s87
      %p91 = pneg %p85
      %p92 = scmp.eq.s32.totalorder %s23, 7
      %p93 = por %p91, %p92
      %p94 = scmp.ne.s32.totalorder %s86, %s89
      %p95 = scmp.eq.s32.totalorder %s23, 0
      %p96 = por %p94, %p95
      %p97 = scmp.ne.s32.totalorder %s86, %s89
      %p98 = scmp.eq.s32.totalorder %s28, 7
      %p99 = por %p97, %p98
      %p100 = scmp.ne.s32.totalorder %s89, %s90
      %p101 = scmp.eq.s32.totalorder %s28, 0
      %p102 = por %p100, %p101
      %p103 = scmp.ne.s32.totalorder %s89, %s90
      %p104 = scmp.eq.s32.totalorder %s29, 7
      %p105 = por %p103, %p104
      %p107 = scmp.ne.s32.totalorder %s90, %s106
      %p108 = scmp.eq.s32.totalorder %s29, 0
      %p109 = por %p107, %p108
      %s110 = ssub.s32 %s30, %s49
      %s111 = ssub.s32 %s32, %s41
      %s112 = sor.u32 %s110, %s111
      %p113 = scmp.eq.s32.totalorder %s112, 0
      %s115 = sadd.s32 %s114, 1
      %s116 = scalar_select %p113, %s114, %s115
      %p119 = pneg %p113
      %p120 = scmp.eq.s32.totalorder %s23, 7
      %p121 = por %p119, %p120
      %p122 = scmp.ne.s32.totalorder %s114, %s117
      %p123 = scmp.eq.s32.totalorder %s23, 0
      %p124 = por %p122, %p123
      %p125 = scmp.ne.s32.totalorder %s114, %s117
      %p126 = scmp.eq.s32.totalorder %s28, 7
      %p127 = por %p125, %p126
      %p128 = scmp.ne.s32.totalorder %s117, %s118
      %p129 = scmp.eq.s32.totalorder %s28, 0
      %p130 = por %p128, %p129
      %p131 = scmp.ne.s32.totalorder %s117, %s118
      %p132 = scmp.eq.s32.totalorder %s29, 7
      %p133 = por %p131, %p132
      %p135 = scmp.ne.s32.totalorder %s118, %s134
      %p136 = scmp.eq.s32.totalorder %s29, 0
      %p137 = por %p135, %p136
      %s138 = ssub.s32 %s30, %s49
      %s139 = ssub.s32 %s31, %s45
      %s140 = sor.u32 %s138, %s139
      %p141 = scmp.eq.s32.totalorder %s140, 0
      %s143 = sadd.s32 %s142, 1
      %s144 = scalar_select %p141, %s142, %s143
      %p147 = pneg %p141
      %p148 = scmp.eq.s32.totalorder %s23, 7
      %p149 = por %p147, %p148
      %p150 = scmp.ne.s32.totalorder %s142, %s145
      %p151 = scmp.eq.s32.totalorder %s23, 0
      %p152 = por %p150, %p151
      %p153 = scmp.ne.s32.totalorder %s142, %s145
      %p154 = scmp.eq.s32.totalorder %s28, 7
      %p155 = por %p153, %p154
      %p156 = scmp.ne.s32.totalorder %s145, %s146
      %p157 = scmp.eq.s32.totalorder %s28, 0
      %p158 = por %p156, %p157
      %p159 = scmp.ne.s32.totalorder %s145, %s146
      %p160 = scmp.eq.s32.totalorder %s29, 7
      %p161 = por %p159, %p160
      %p163 = scmp.ne.s32.totalorder %s146, %s162
      %p164 = scmp.eq.s32.totalorder %s29, 0
      %p165 = por %p163, %p164
      %s166 = ssub.s32 %s30, %s49
      %s167 = ssub.s32 %s31, %s45
      %s168 = sor.u32 %s166, %s167
      %p169 = scmp.eq.s32.totalorder %s168, 0
      %s171 = sadd.s32 %s170, 1
      %s172 = scalar_select %p169, %s170, %s171
      %p175 = pneg %p169
      %p176 = scmp.eq.s32.totalorder %s23, 7
      %p177 = por %p175, %p176
      %p178 = scmp.ne.s32.totalorder %s170, %s173
      %p179 = scmp.eq.s32.totalorder %s23, 0
      %p180 = por %p178, %p179
      %p181 = scmp.ne.s32.totalorder %s170, %s173
      %p182 = scmp.eq.s32.totalorder %s28, 7
      %p183 = por %p181, %p182
      %p184 = scmp.ne.s32.totalorder %s173, %s174
      %p185 = scmp.eq.s32.totalorder %s28, 0
      %p186 = por %p184, %p185
      %p187 = scmp.ne.s32.totalorder %s173, %s174
      %p188 = scmp.eq.s32.totalorder %s29, 7
      %p189 = por %p187, %p188
      %p191 = scmp.ne.s32.totalorder %s174, %s190
      %p192 = scmp.eq.s32.totalorder %s29, 0
      %p193 = por %p191, %p192
      %p194 = scmp.le.s32.totalorder 1, %s23
      %p195 = scmp.lt.s32.totalorder %s23, 9
      %p196 = pnand %p194, %p195
      %p197 = pneg %p196
      // Predicated region
      $region9: #{tpu_custom_call.1} parent=5 // pred_check
        _
      $region10: #{tpu_custom_call.1} parent=5 // pred_check_branch
        %199 = sbr.rel (%p196) target = $region12
      $region11: #{tpu_custom_call.1} parent=5 // pred_region
        %s200 = ssub.s32 %s23, 1
      $region12: #{tpu_custom_call.1} parent=5 // pred_fallthru
        _
      %p201 = scmp.lt.s32.totalorder %s23, 8
      // Predicated region
      $region13: #{tpu_custom_call.1} parent=5 // pred_check
        %p202 = pneg %p201
      $region14: #{tpu_custom_call.1} parent=5 // pred_check_branch
        %204 = sbr.rel (%p202) target = $region16
      $region15: #{tpu_custom_call.1} parent=5 // pred_region
        // Predicated region
        $region17: #{tpu_custom_call.1} parent=15 // pred_check
          %p205 = pneg %p66
        $region18: #{tpu_custom_call.1} parent=15 // pred_check_branch
          %207 = sbr.rel (%p205) target = $region20
        $region19: #{tpu_custom_call.1} parent=15 // pred_region
          #allocation11 [shape = 'u32[6]{0}', space=smem, size = 0x18, scoped, tag = 'DMA stride descriptor']
          %s208 = sand.u32 %s56, 1
          %s209 = scalar_lea.sflag [#allocation3], %s208
          %s210 = sand.u32 %s56, 1
          %s211 = smul.addr %s210, 24
          %s212 = scalar_lea.vmem [#allocation2], %s211
          %s213 = smul.u32 4, %s32
          %s214 = ssub.s32 1, %s213
          %s215 = smul.u32 96, %s214
          %s217 = ssub.s32 384, %s215
          %218 = vsyncadd %s209, %s217
          %p219 = scmp.ne.s32.totalorder 0, %s215
          %s220 = smul.addr %s31, 3
          %s221 = sadd.s32 %s213, %s220
          %s222 = smul.addr %s30, 12
          %s223 = sadd.s32 %s221, %s222
          %s224 = smul.addr %s223, 32
          %s225 = scalar_lea.hbm %s0, %s224
          %s226 = smul.u32 2, %s214
          %s227 = smul.u32 %s226, 3
          %s229 = sshll.u32 1, 14
          %s230 = sxor.u32 4294967295, %s229
          %s232 = sld [smem:[#allocation0]]
          %s233 = sadd.s32 2, %s232
          %s235 = sshll.u32 7, 26
          %s236 = sxor.u32 4294967295, %s235
          %s237 = sand.u32 0, %s236
          %s238 = sshll.u32 %s233, 26
          %s239 = sor.u32 %s237, %s238
          %s240 = sshll.u32 %s212, 4
          %s241 = int_to_ptr.vmem [resolvable:$true] %s240
          %s242 = sshll.u32 %s227, 4
          %247 = sst [smem:[#allocation11]] 32
          %s248 = scalar_lea.smem [#allocation11], 1
          %249 = sst [smem:[%s248]] 128
          %s250 = scalar_lea.smem [#allocation11], 2
          %251 = sst [smem:[%s250]] %s214
          %s252 = scalar_lea.smem [#allocation11], 3
          %253 = sst [smem:[%s252]] 32
          %s254 = scalar_lea.smem [#allocation11], 4
          %255 = sst [smem:[%s254]] 32
          %s256 = scalar_lea.smem [#allocation11], 5
          %257 = sst [smem:[%s256]] 2
          %259 = dma.general (%p219), %s225, %s242, %s241, %s209, [#allocation10], [#allocation11], %s239, 0
        $region20: #{tpu_custom_call.1} parent=15 // pred_fallthru
          _
        // Predicated region
        $region21: #{tpu_custom_call.1} parent=15 // pred_check
          %p260 = pneg %p96
        $region22: #{tpu_custom_call.1} parent=15 // pred_check_branch
          %262 = sbr.rel (%p260) target = $region24
        $region23: #{tpu_custom_call.1} parent=15 // pred_region
          #allocation13 [shape = 'u32[6]{0}', space=smem, size = 0x18, scoped, tag = 'DMA stride descriptor']
          %s263 = sand.u32 %s86, 1
          %s264 = scalar_lea.sflag [#allocation6], %s263
          %s265 = sand.u32 %s86, 1
          %s266 = smul.addr %s265, 24
          %s267 = scalar_lea.vmem [#allocation5], %s266
          %s268 = smul.u32 4, %s32
          %s269 = ssub.s32 1, %s268
          %s270 = smul.u32 96, %s269
          %s272 = ssub.s32 384, %s270
          %273 = vsyncadd %s264, %s272
          %p274 = scmp.ne.s32.totalorder 0, %s270
          %s275 = smul.addr %s31, 3
          %s276 = sadd.s32 %s268, %s275
          %s277 = smul.addr %s30, 12
          %s278 = sadd.s32 %s276, %s277
          %s279 = smul.addr %s278, 32
          %s280 = scalar_lea.hbm %s1, %s279
          %s281 = smul.u32 2, %s269
          %s282 = smul.u32 %s281, 3
          %s284 = sshll.u32 1, 14
          %s285 = sxor.u32 4294967295, %s284
          %s287 = sld [smem:[#allocation0]]
          %s288 = sadd.s32 2, %s287
          %s290 = sshll.u32 7, 26
          %s291 = sxor.u32 4294967295, %s290
          %s292 = sand.u32 0, %s291
          %s293 = sshll.u32 %s288, 26
          %s294 = sor.u32 %s292, %s293
          %s295 = sshll.u32 %s267, 4
          %s296 = int_to_ptr.vmem [resolvable:$true] %s295
          %s297 = sshll.u32 %s282, 4
          %302 = sst [smem:[#allocation13]] 32
          %s303 = scalar_lea.smem [#allocation13], 1
          %304 = sst [smem:[%s303]] 128
          %s305 = scalar_lea.smem [#allocation13], 2
          %306 = sst [smem:[%s305]] %s269
          %s307 = scalar_lea.smem [#allocation13], 3
          %308 = sst [smem:[%s307]] 32
          %s309 = scalar_lea.smem [#allocation13], 4
          %310 = sst [smem:[%s309]] 32
          %s311 = scalar_lea.smem [#allocation13], 5
          %312 = sst [smem:[%s311]] 2
          %314 = dma.general (%p274), %s280, %s297, %s296, %s264, [#allocation12], [#allocation13], %s294, 0
        $region24: #{tpu_custom_call.1} parent=15 // pred_fallthru
          _
        // Predicated region
        $region25: #{tpu_custom_call.1} parent=15 // pred_check
          %p315 = pneg %p124
        $region26: #{tpu_custom_call.1} parent=15 // pred_check_branch
          %317 = sbr.rel (%p315) target = $region28
        $region27: #{tpu_custom_call.1} parent=15 // pred_region
          %s318 = smul.u32 4, %s32
          %s319 = ssub.s32 1, %s318
          %s320 = smul.u32 32, %s319
          %p321 = scmp.lt.s32.totalorder %s30, 1
          %s322 = scalar_select %p321, %s30, 1
          %p323 = scmp.lt.s32.totalorder %s318, 0
          %s324 = scalar_select %p323, %s318, 0
          %s325 = sadd.s32 %s324, %s322
          %s326 = smul.addr %s325, 2
          %s327 = scalar_lea.vmem %s2, %s326
          %s328 = smul.u32 4, %s32
          %s329 = ssub.s32 1, %s328
          %s330 = smul.u32 32, %s329
        $region28: #{tpu_custom_call.1} parent=15 // pred_fallthru
          _
      $region16: #{tpu_custom_call.1} parent=5 // pred_fallthru
        _
      %p331 = scmp.le.s32.totalorder 1, %s23
      %p332 = scmp.lt.s32.totalorder %s23, 9
      %p333 = pnand %p331, %p332
      %p334 = pneg %p333
      // Predicated region
      $region29: #{tpu_custom_call.1} parent=5 // pred_check
        _
      $region30: #{tpu_custom_call.1} parent=5 // pred_check_branch
        %336 = sbr.rel (%p333) target = $region32
      $region31: #{tpu_custom_call.1} parent=5 // pred_region
        %s337 = ssub.s32 %s23, 1
        %s338 = sand.u32 %s59, 1
        %s339 = scalar_lea.sflag [#allocation3], %s338
        %s340 = sand.u32 %s59, 1
        %s341 = smul.addr %s340, 24
        %s342 = scalar_lea.vmem [#allocation2], %s341
        // Predicated region
        $region33: #{tpu_custom_call.1} parent=31 // pred_check
          %p343 = pneg %p72
        $region34: #{tpu_custom_call.1} parent=31 // pred_check_branch
          %345 = sbr.rel (%p343) target = $region36
        $region35: #{tpu_custom_call.1} parent=31 // pred_region
          %346 = dma.done %s339, 384
        $region36: #{tpu_custom_call.1} parent=31 // pred_fallthru
          _
        %s347 = sand.u32 %s89, 1
        %s348 = scalar_lea.sflag [#allocation6], %s347
        %s349 = sand.u32 %s89, 1
        %s350 = smul.addr %s349, 24
        %s351 = scalar_lea.vmem [#allocation5], %s350
        // Predicated region
        $region37: #{tpu_custom_call.1} parent=31 // pred_check
          %p352 = pneg %p102
        $region38: #{tpu_custom_call.1} parent=31 // pred_check_branch
          %354 = sbr.rel (%p352) target = $region40
        $region39: #{tpu_custom_call.1} parent=31 // pred_region
          %355 = dma.done %s348, 384
        $region40: #{tpu_custom_call.1} parent=31 // pred_fallthru
          _
        %s356 = sand.u32 %s59, 1
        %s357 = scalar_lea.sflag [#allocation3], %s356
        %s358 = sand.u32 %s59, 1
        %s359 = smul.addr %s358, 24
        %s360 = scalar_lea.vmem [#allocation2], %s359
        %p361 = pneg %p72
        %p362 = pneg %p69
        %s363 = sand.u32 %s89, 1
        %s364 = scalar_lea.sflag [#allocation6], %s363
        %s365 = sand.u32 %s89, 1
        %s366 = smul.addr %s365, 24
        %s367 = scalar_lea.vmem [#allocation5], %s366
        %p368 = pneg %p102
        %p369 = pneg %p99
        %s370 = smul.u32 4, %s35
        %s371 = ssub.s32 1, %s370
        %s372 = smul.u32 32, %s371
        %p373 = scmp.lt.s32.totalorder %s33, 1
        %s374 = scalar_select %p373, %s33, 1
        %p375 = scmp.lt.s32.totalorder %s370, 0
        %s376 = scalar_select %p375, %s370, 0
        %s377 = sadd.s32 %s376, %s374
        %s378 = smul.addr %s377, 2
        %s379 = scalar_lea.vmem %s2, %s378
        %p380 = pneg %p130
        %p381 = pneg %p127
        %p382 = pneg %p158
        %p383 = pneg %p155
        %s384 = sand.u32 %s145, 1
        %s385 = scalar_lea.sflag [#allocation4], %s384
        %s386 = sand.u32 %s145, 1
        %s387 = smul.addr %s386, 8
        %s388 = scalar_lea.vmem [#allocation7], %s387
        %p389 = pneg %p186
        %p390 = pneg %p183
        %s391 = sand.u32 %s173, 1
        %s392 = scalar_lea.sflag [#allocation9], %s391
        %s393 = sand.u32 %s173, 1
        %s394 = smul.addr %s393, 8
        %s395 = scalar_lea.vmem [#allocation8], %s394
        %s396 = smul.u32 4, %s35
        %s397 = ssub.s32 1, %s396
        %s398 = smul.u32 96, %s397
        %s399 = smul.u32 4, %s35
        %s400 = ssub.s32 1, %s399
        %s401 = smul.u32 96, %s400
        %s402 = smul.u32 4, %s35
        %s403 = ssub.s32 1, %s402
        %s404 = smul.u32 32, %s403
        %p405 = scmp.lt.s32.totalorder %s33, 1
        %s406 = scalar_select %p405, %s33, 1
        %p407 = scmp.lt.s32.totalorder %s402, 0
        %s408 = scalar_select %p407, %s402, 0
        %s409 = sadd.s32 %s408, %s406
        %s410 = smul.addr %s409, 2
        %s411 = scalar_lea.vmem %s2, %s410
        %s412 = smul.u32 4, %s35
        %s413 = ssub.s32 1, %s412
        %s414 = smul.u32 32, %s413
        %p415 = scmp.eq.s32.totalorder %s35, 0
        // Predicated region
        $region41: #{tpu_custom_call.1} parent=31 // pred_check
          %p416 = pneg %p415
        $region42: #{tpu_custom_call.1} parent=31 // pred_check_branch
          %418 = sbr.rel (%p416) target = $region44
        $region43: #{tpu_custom_call.1} parent=31 // pred_region
          %419 = vst [vmem:[%s388] sm:$0xff] 0.0
          %420 = vst [vmem:[%s395] sm:$0xff] 0.0
        $region44: #{tpu_custom_call.1} parent=31 // pred_fallthru
          _
        %v421 = vld [vmem:[%s342] sm:$0xff]
        %v422 = vld [vmem:[%s342 + $0x8] sm:$0xff]
        %v423 = vld [vmem:[%s342 + $0x10] sm:$0xff]
        %v424 = vld [vmem:[%s351] sm:$0xff]
        %v425 = vld [vmem:[%s351 + $0x8] sm:$0xff]
        %v426 = vld [vmem:[%s351 + $0x10] sm:$0xff]
        %v427 = vld [vmem:[%s411] sm:$0xff]
        %v428 = vsub.f32 %v421, %v424
        %v429 = vsub.f32 %v422, %v425
        %v430 = vsub.f32 %v423, %v426
        %v431 = vand.u32 2147483647, %v428
        %v432 = vand.u32 2147483647, %v429
        %v433 = vand.u32 2147483647, %v430
        %v434 = vlaneseq
        %v435 = vshrl.u32 %v434, 7
        %v436 = vlaneseq
        %v437 = vand.u32 %v436, 127
        %s438 = smul.u32 %s35, 8
        %v439 = vstv %s438
        %v440 = vadd.s32 %v439, %v435
        %v441 = vmul.u32 %v440, 128
        %v442 = vadd.s32 %v441, %v437
        %vm443 = vcmp.lt.s32.totalorder %v442, 256
        %v444 = vsel %vm443, %v427, 0.0
        %v445 = vmul.f32 %v431, %v444
        %v446 = vmul.f32 %v432, %v444
        %v447 = vmul.f32 %v433, %v444
        %v448 = vsel %vm443, 1, 0
        %vm449 = vcmp.eq.s32.totalorder %v448, 1
        %v450 = vsel %vm449, %v445, 0.0
        %v451 = vsel %vm449, %v446, 0.0
        %v452 = vsel %vm449, %v447, 0.0
        %v453 = vadd.f32 %v450, %v451
        %v454 = vadd.f32 %v453, %v452
        %v455 = vld [vmem:[%s388] sm:$0xff]
        %v456 = vadd.f32 %v454, 0.0
        %v457 = vadd.f32 %v455, %v456
        %458 = vst [vmem:[%s388] sm:$0xff] %v457
        %v459 = vld [vmem:[%s395] sm:$0xff]
        %v460 = vadd.f32 %v444, 0.0
        %v461 = vadd.f32 %v459, %v460
        %462 = vst [vmem:[%s395] sm:$0xff] %v461
        %s463 = sand.u32 %s145, 1
        %s464 = scalar_lea.sflag [#allocation4], %s463
        %s465 = sand.u32 %s145, 1
        %s466 = smul.addr %s465, 8
        %s467 = scalar_lea.vmem [#allocation7], %s466
        %s468 = sand.u32 %s173, 1
        %s469 = scalar_lea.sflag [#allocation9], %s468
        %s470 = sand.u32 %s173, 1
        %s471 = smul.addr %s470, 8
        %s472 = scalar_lea.vmem [#allocation8], %s471
        // Predicated region
        $region45: #{tpu_custom_call.1} parent=31 // pred_check
          %p473 = pneg %p155
        $region46: #{tpu_custom_call.1} parent=31 // pred_check_branch
          %475 = sbr.rel (%p473) target = $region48
        $region47: #{tpu_custom_call.1} parent=31 // pred_region
          %s477 = ssub.s32 128, 128
          %478 = vsyncadd %s464, %s477
          %s479 = smul.addr %s33, 4
          %s480 = sadd.s32 %s34, %s479
          %s481 = smul.addr %s480, 128
          %s482 = scalar_lea.hbm %s3, %s481
          %s484 = sshll.u32 %s467, 4
          %s485 = int_to_ptr.vmem [resolvable:$true] %s484
          %487 = dma.vmem_to_hbm [thread:$0]  %s485, 128, %s482, %s464
        $region48: #{tpu_custom_call.1} parent=31 // pred_fallthru
          _
        // Predicated region
        $region49: #{tpu_custom_call.1} parent=31 // pred_check
          %p488 = pneg %p183
        $region50: #{tpu_custom_call.1} parent=31 // pred_check_branch
          %490 = sbr.rel (%p488) target = $region52
        $region51: #{tpu_custom_call.1} parent=31 // pred_region
          %s492 = ssub.s32 128, 128
          %493 = vsyncadd %s469, %s492
          %s494 = smul.addr %s33, 4
          %s495 = sadd.s32 %s34, %s494
          %s496 = smul.addr %s495, 128
          %s497 = scalar_lea.hbm %s4, %s496
          %s499 = sshll.u32 %s472, 4
          %s500 = int_to_ptr.vmem [resolvable:$true] %s499
          %502 = dma.vmem_to_hbm [thread:$0]  %s500, 128, %s497, %s469
        $region52: #{tpu_custom_call.1} parent=31 // pred_fallthru
          _
      $region32: #{tpu_custom_call.1} parent=5 // pred_fallthru
        _
      %p503 = scmp.le.s32.totalorder 2, %s23
      // Predicated region
      $region53: #{tpu_custom_call.1} parent=5 // pred_check
        %p504 = pneg %p503
      $region54: #{tpu_custom_call.1} parent=5 // pred_check_branch
        %506 = sbr.rel (%p504) target = $region56
      $region55: #{tpu_custom_call.1} parent=5 // pred_region
        %s507 = ssub.s32 %s23, 2
        // Predicated region
        $region57: #{tpu_custom_call.1} parent=55 // pred_check
          %p508 = pneg %p161
        $region58: #{tpu_custom_call.1} parent=55 // pred_check_branch
          %510 = sbr.rel (%p508) target = $region60
        $region59: #{tpu_custom_call.1} parent=55 // pred_region
          %s511 = sand.u32 %s146, 1
          %s512 = scalar_lea.sflag [#allocation4], %s511
          %s513 = sand.u32 %s146, 1
          %s514 = smul.addr %s513, 8
          %s515 = scalar_lea.vmem [#allocation7], %s514
          %516 = dma.done %s512, 128
        $region60: #{tpu_custom_call.1} parent=55 // pred_fallthru
          _
        // Predicated region
        $region61: #{tpu_custom_call.1} parent=55 // pred_check
          %p517 = pneg %p189
        $region62: #{tpu_custom_call.1} parent=55 // pred_check_branch
          %519 = sbr.rel (%p517) target = $region64
        $region63: #{tpu_custom_call.1} parent=55 // pred_region
          %s520 = sand.u32 %s174, 1
          %s521 = scalar_lea.sflag [#allocation9], %s520
          %s522 = sand.u32 %s174, 1
          %s523 = smul.addr %s522, 8
          %s524 = scalar_lea.vmem [#allocation8], %s523
          %525 = dma.done %s521, 128
        $region64: #{tpu_custom_call.1} parent=55 // pred_fallthru
          _
      $region56: #{tpu_custom_call.1} parent=5 // pred_fallthru
        _
    $region6: #{tpu_custom_call.1} parent=1 // loop_footer
      %s27 = sadd.s32 1, %s23
    $region7: #{tpu_custom_call.1} parent=1 // loop_footer_branch
      %22 = sbr.rel target = $region3
    $region8: #{tpu_custom_call.1} parent=1 // loop_exit
      _
    %526 = vsyncpa [#allocation3], 1
    %s527 = scalar_lea.sflag [#allocation3], 1
    %528 = vsyncpa %s527, 1
    %529 = vsyncpa [#allocation6], 1
    %s530 = scalar_lea.sflag [#allocation6], 1
    %531 = vsyncpa %s530, 1
    %532 = vsyncpa [#allocation4], 1
    %s533 = scalar_lea.sflag [#allocation4], 1
    %534 = vsyncpa %s533, 1
    %535 = vsyncpa [#allocation9], 1
    %s536 = scalar_lea.sflag [#allocation9], 1
    %537 = vsyncpa %s536, 1

</llo_original>
